<compile_context>
chip_gen: v7x
topology: tpu7x:2x2x1
jax: 0.10.0
libtpu: 0.0.40
codegen_flags: <defaults>
</compile_context>

<pallas_src>
import functools

import numpy as np
import jax
import jax.numpy as jnp
from jax import lax
from jax.experimental import pallas as pl
from jax.experimental.pallas import tpu as pltpu


def _round_up(x, m):
    return (x + m - 1) // m * m


def _prf_counts_kernel(thr_ref, pred_ref, yaug_ref, tp_ref, t1_ref, *,
                       lane_chunk, unroll):
    """Accumulate TP[b, t] and T1[b, t] over the spatial (j) grid axis.

    thr_ref : [thr_block, 1]            f32  thresholds on sublanes
    pred_ref: [B, spatial_block]        f32
    yaug_ref: [aug_pad, spatial_block]  bf16 row 0 = ones, rows 1..B = Y, rest 0
    tp_ref  : [B, thr_block]            f32  resident accumulator across j
    t1_ref  : [B, thr_block]            f32  resident accumulator across j
    """
    j = pl.program_id(1)

    @pl.when(j == 0)
    def _init():
        tp_ref[...] = jnp.zeros_like(tp_ref)
        t1_ref[...] = jnp.zeros_like(t1_ref)

    thr = thr_ref[...]                         # [TB, 1] f32
    tb = thr.shape[0]
    batch = pred_ref.shape[0]
    aug = yaug_ref.shape[0]
    spatial_block = pred_ref.shape[1]
    n_chunks = spatial_block // lane_chunk

    def chunk_body(c, accs):
        start = pl.multiple_of(c * lane_chunk, lane_chunk)
        sl = pl.ds(start, lane_chunk)
        # [ones | Y] chunk: loaded once per chunk, reused for every batch row.
        y_chunk = yaug_ref[:, sl]              # [aug, C] bf16
        new = []
        for b in range(batch):                 # static, small
            pred_row = pred_ref[pl.ds(b, 1), sl]              # [1, C] f32
            # f32 compare (matches the reference exactly); implicit broadcast
            # [TB,1] x [1,C] -> [TB,C].  One cast feeds the MXU; values are
            # exactly 0/1 so bf16 + f32 accumulation is exact.
            # (On v5e a pure-f32 MXU path avoids bf16 pack ops if desired.)
            mask = (pred_row >= thr).astype(jnp.bfloat16)     # [TB, C]
            # Fused T1/TP reduction: one MXU matmul per (batch, chunk).
            #   [aug, C] . [TB, C]^T -> [aug, TB]  (row 0 -> T1, row 1+b -> TP)
            part = lax.dot_general(
                y_chunk, mask,
                dimension_numbers=(((1,), (1,)), ((), ())),
                preferred_element_type=jnp.float32)
            new.append(accs[b] + part)
        return tuple(new)

    init = tuple(jnp.zeros((aug, tb), jnp.float32) for _ in range(batch))
    accs = lax.fori_loop(0, n_chunks, chunk_body, init, unroll=unroll)

    # One lane-dense, full-block read-modify-write per output per grid step.
    t1_upd = jnp.concatenate([accs[b][0:1, :] for b in range(batch)], axis=0)
    tp_upd = jnp.concatenate([accs[b][b + 1:b + 2, :] for b in range(batch)],
                             axis=0)
    tp_ref[...] += tp_upd
    t1_ref[...] += t1_upd


def prf_pallas(pred, y_bool, thresholds, *, thr_block=None,
               spatial_block_max=16384, lane_chunk=512, unroll=2):
    """PRF.forward: returns {'P': [T], 'R': [T], 'F': [T]} (per-threshold scalars)."""
    B, H, W = pred.shape
    HW = H * W
    T = thresholds.shape[0]

    # ---- tile-size selection -------------------------------------------------
    lane_chunk = max(128, min(lane_chunk, _round_up(HW, 128)))
    hw_ceil = _round_up(HW, lane_chunk)
    if hw_ceil <= spatial_block_max:
        spatial_block = hw_ceil                    # single spatial grid step
    else:
        candidates = []
        sb = lane_chunk
        while sb <= spatial_block_max:
            candidates.append(sb)
            sb *= 2
        # padded pixels each cost ~T compares; add a per-grid-step overhead proxy.
        spatial_block = min(
            candidates,
            key=lambda s: (_round_up(HW, s) - HW) + 4096 * ((HW + s - 1) // s))
    n_chunks = spatial_block // lane_chunk
    unroll = max(1, min(unroll, n_chunks))

    if thr_block is None:
        # Single-TC chips (v5e/v6e): one big threshold block -> pred/Y stream
        # from HBM once.  On v7x pass thr_block=128 so the "parallel" threshold
        # axis has 2 blocks (one per TensorCore).
        thr_block = min((128, 256), key=lambda tb: (_round_up(T, tb), -tb))
    assert thr_block % 128 == 0

    HW_pad = _round_up(HW, spatial_block)
    T_pad = _round_up(T, thr_block)
    aug_pad = _round_up(1 + B, 8)

    # ---- operand staging -----------------------------------------------------
    pred2 = pred.reshape(B, HW).astype(jnp.float32)
    y2 = y_bool.reshape(B, HW).astype(jnp.float32)
    # Augmented targets [ones ; Y ; 0-pad] -> fused T1/TP matmul operand.
    y_aug = jnp.zeros((aug_pad, HW), jnp.float32)
    y_aug = y_aug.at[0, :].set(1.0).at[1:1 + B, :].set(y2)
    if HW_pad != HW:
        # padded predictions sit below every real threshold -> contribute nothing
        pred2 = jnp.pad(pred2, ((0, 0), (0, HW_pad - HW)),
                        constant_values=float('-inf'))
        y_aug = jnp.pad(y_aug, ((0, 0), (0, HW_pad - HW)))
    y_aug = y_aug.astype(jnp.bfloat16)             # {0,1} is exact in bf16

    thr2 = thresholds.astype(jnp.float32)
    if T_pad != T:
        # padded thresholds sit above every real prediction -> all-false masks
        thr2 = jnp.pad(thr2, (0, T_pad - T), constant_values=float('inf'))
    thr2 = thr2.reshape(T_pad, 1)

    grid = (T_pad // thr_block, HW_pad // spatial_block)
    kernel = functools.partial(_prf_counts_kernel, lane_chunk=lane_chunk,
                               unroll=unroll)

    tp, t1 = pl.pallas_call(
        kernel,
        out_shape=(
            jax.ShapeDtypeStruct((B, T_pad), jnp.float32),
            jax.ShapeDtypeStruct((B, T_pad), jnp.float32),
        ),
        grid_spec=pltpu.PrefetchScalarGridSpec(
            num_scalar_prefetch=0,
            grid=grid,
            in_specs=[
                pl.BlockSpec((thr_block, 1), lambda i, j: (i, 0)),            # thresholds
                pl.BlockSpec((B, spatial_block), lambda i, j: (0, j)),        # predictions
                pl.BlockSpec((aug_pad, spatial_block), lambda i, j: (0, j)),  # [ones | Y]
            ],
            out_specs=[
                pl.BlockSpec((B, thr_block), lambda i, j: (0, i)),            # TP
                pl.BlockSpec((B, thr_block), lambda i, j: (0, i)),            # T1
            ],
        ),
        compiler_params=pltpu.CompilerParams(
            dimension_semantics=("parallel", "arbitrary")),
    )(thr2, pred2, y_aug)

    tp = tp[:, :T]   # [B, T]
    t1 = t1[:, :T]

    # T2 is a trivial reduction of the (fixed) targets -> plain XLA.
    t2 = jnp.sum(y_bool.reshape(B, HW).astype(jnp.float32), axis=-1)   # [B]

    eps = 1e-9
    P = jnp.mean(tp / (t1 + eps), axis=0)              # [T]
    R = jnp.mean(tp / (t2[:, None] + eps), axis=0)     # [T]
    F = 1.3 * P * R / (R + 0.3 * P + eps)              # [T]
    # Note: the PyTorch module returns python lists of scalar tensors; entry k
    # of these arrays is the scalar for threshold k.
    # Note: f32 count accumulation is exact up to 2^24 pixels per image.
    return {'P': P, 'R': R, 'F': F}


def prf_ref(pred, y_bool, thresholds):
    """Pure-JAX reference matching the PyTorch forward exactly."""
    masks = pred[None, ...] >= thresholds[:, None, None, None]              # [T,B,H,W]
    tp = jnp.sum(masks & y_bool[None, ...], axis=(-1, -2)).astype(jnp.float32)
    t1 = jnp.sum(masks, axis=(-1, -2)).astype(jnp.float32)
    t2 = jnp.sum(y_bool, axis=(-1, -2)).astype(jnp.float32)
    eps = 1e-9
    P = jnp.mean(tp / (t1 + eps), axis=-1)
    R = jnp.mean(tp / (t2[None, :] + eps), axis=-1)
    F = 1.3 * P * R / (R + 0.3 * P + eps)
    return {'P': P, 'R': R, 'F': F}


if __name__ == "__main__":
    key = jax.random.PRNGKey(0)
    k1, k2 = jax.random.split(key)

    B, H, W = 2, 16, 16
    steps, end = 255, 1

    # deterministic synthetic inputs: predictions in [0,1), boolean targets
    pred = jax.random.uniform(k1, (B, H, W), dtype=jnp.float32)
    y = jax.random.uniform(k2, (B, H, W), dtype=jnp.float32) > 0.5
    thresholds = jnp.linspace(0.0, float(end), steps, dtype=jnp.float32)

    out = prf_pallas(pred, y, thresholds)
    out = jax.block_until_ready(out)

    ref = prf_ref(pred, y, thresholds)
    for name in ("P", "R", "F"):
        np.testing.assert_allclose(np.asarray(out[name]), np.asarray(ref[name]),
                                   rtol=1e-5, atol=1e-6)

    print("KERNEL_OK")
</pallas_src>

<mosaic_0001>
module attributes {stable_mosaic.version = 11 : i64} {
  func.func @_prf_counts_kernel(%arg0: i32, %arg1: i32, %arg2: memref<256x1xf32, #tpu.memory_space<vmem>>, %arg3: memref<2x256xf32, #tpu.memory_space<vmem>>, %arg4: memref<8x256xbf16, #tpu.memory_space<vmem>>, %arg5: memref<2x256xf32, #tpu.memory_space<vmem>>, %arg6: memref<2x256xf32, #tpu.memory_space<vmem>>) attributes {dimension_semantics = [#tpu.dimension_semantics<parallel>, #tpu.dimension_semantics<arbitrary>], iteration_bounds = array<i64: 1, 1>, scalar_prefetch = 0 : i64, scratch_operands = 0 : i64, tpu.core_type = #tpu.core_type<tc>, window_params = [{transform_indices = @transform_0, window_bounds = array<i64: 256, 1>}, {transform_indices = @transform_1, window_bounds = array<i64: 2, 256>}, {transform_indices = @transform_2, window_bounds = array<i64: 8, 256>}, {transform_indices = @transform_3, window_bounds = array<i64: 2, 256>}, {transform_indices = @transform_4, window_bounds = array<i64: 2, 256>}]} {
    %c0_i32 = arith.constant 0 : i32
    %0 = arith.cmpi eq, %arg1, %c0_i32 : i32
    %1 = arith.extui %0 : i1 to i32
    %c0_i32_0 = arith.constant 0 : i32
    %2 = arith.cmpi ne, %1, %c0_i32_0 : i32
    scf.if %2 {
      %cst_16 = arith.constant 0.000000e+00 : f32
      %42 = vector.broadcast %cst_16 : f32 to vector<2x256xf32>
      %c0_17 = arith.constant 0 : index
      %c0_18 = arith.constant 0 : index
      %43 = vector.load %arg5[%c0_17, %c0_18] : memref<2x256xf32, #tpu.memory_space<vmem>>, vector<2x256xf32>
      tpu.vector_store %arg5[%c0_17, %c0_18], %42 {strides = array<i32>} : memref<2x256xf32, #tpu.memory_space<vmem>>, vector<2x256xf32>,
      %cst_19 = arith.constant 0.000000e+00 : f32
      %44 = vector.broadcast %cst_19 : f32 to vector<2x256xf32>
      %c0_20 = arith.constant 0 : index
      %c0_21 = arith.constant 0 : index
      %45 = vector.load %arg6[%c0_20, %c0_21] : memref<2x256xf32, #tpu.memory_space<vmem>>, vector<2x256xf32>
      tpu.vector_store %arg6[%c0_20, %c0_21], %44 {strides = array<i32>} : memref<2x256xf32, #tpu.memory_space<vmem>>, vector<2x256xf32>,
    } else {
    }
    %c0 = arith.constant 0 : index
    %c0_1 = arith.constant 0 : index
    %3 = vector.load %arg2[%c0, %c0_1] : memref<256x1xf32, #tpu.memory_space<vmem>>, vector<256x1xf32>
    %cst = arith.constant 0.000000e+00 : f32
    %4 = vector.broadcast %cst : f32 to vector<8x256xf32>
    %cst_2 = arith.constant 0.000000e+00 : f32
    %5 = vector.broadcast %cst_2 : f32 to vector<8x256xf32>
    %c0_i32_3 = arith.constant 0 : i32
    %c256_i32 = arith.constant 256 : i32
    %6 = arith.muli %c0_i32_3, %c256_i32 : i32
    %7 = tpu.assume_multiple %6, 256 : i32
    %c0_4 = arith.constant 0 : index
    %8 = arith.index_cast %7 : i32 to index
    %9 = vector.load %arg4[%c0_4, %8] : memref<8x256xbf16, #tpu.memory_space<vmem>>, vector<8x256xbf16>
    %c0_5 = arith.constant 0 : index
    %10 = arith.index_cast %7 : i32 to index
    %11 = vector.load %arg3[%c0_5, %10] : memref<2x256xf32, #tpu.memory_space<vmem>>, vector<1x256xf32>
    %12 = vector.broadcast %11 : vector<1x256xf32> to vector<256x256xf32>
    %13 = vector.broadcast %3 : vector<256x1xf32> to vector<256x256xf32>
    %14 = arith.cmpf oge, %12, %13 : vector<256x256xf32>
    %15 = arith.extui %14 : vector<256x256xi1> to vector<256x256xi32>
    %16 = arith.sitofp %15 : vector<256x256xi32> to vector<256x256xf32>
    %17 = arith.truncf %16 : vector<256x256xf32> to vector<256x256xbf16>
    %cst_6 = arith.constant dense<0.000000e+00> : vector<8x256xf32>
    %18 = tpu.matmul %9, %17, %cst_6 {dimension_numbers = #tpu.dot_dimension_numbers<[1], [1], [0], [0], [0, 0, 1, 0], [], []>} : vector<8x256xbf16>, vector<256x256xbf16>, vector<8x256xf32> -> vector<8x256xf32>
    %19 = arith.addf %4, %18 : vector<8x256xf32>
    %c1 = arith.constant 1 : index
    %20 = arith.index_cast %7 : i32 to index
    %21 = vector.load %arg3[%c1, %20] : memref<2x256xf32, #tpu.memory_space<vmem>>, vector<1x256xf32>
    %22 = vector.broadcast %21 : vector<1x256xf32> to vector<256x256xf32>
    %23 = vector.broadcast %3 : vector<256x1xf32> to vector<256x256xf32>
    %24 = arith.cmpf oge, %22, %23 : vector<256x256xf32>
    %25 = arith.extui %24 : vector<256x256xi1> to vector<256x256xi32>
    %26 = arith.sitofp %25 : vector<256x256xi32> to vector<256x256xf32>
    %27 = arith.truncf %26 : vector<256x256xf32> to vector<256x256xbf16>
    %cst_7 = arith.constant dense<0.000000e+00> : vector<8x256xf32>
    %28 = tpu.matmul %9, %27, %cst_7 {dimension_numbers = #tpu.dot_dimension_numbers<[1], [1], [0], [0], [0, 0, 1, 0], [], []>} : vector<8x256xbf16>, vector<256x256xbf16>, vector<8x256xf32> -> vector<8x256xf32>
    %29 = arith.addf %5, %28 : vector<8x256xf32>
    %c1_i32 = arith.constant 1 : i32
    %30 = vector.extract_strided_slice %19 {offsets = [0, 0], sizes = [1, 256], strides = [1, 1]} : vector<8x256xf32> to vector<1x256xf32>
    %31 = vector.extract_strided_slice %29 {offsets = [0, 0], sizes = [1, 256], strides = [1, 1]} : vector<8x256xf32> to vector<1x256xf32>
    %32 = tpu.concatenate %30, %31 in 0 : vector<1x256xf32>, vector<1x256xf32> -> vector<2x256xf32>
    %33 = vector.extract_strided_slice %19 {offsets = [1, 0], sizes = [1, 256], strides = [1, 1]} : vector<8x256xf32> to vector<1x256xf32>
    %34 = vector.extract_strided_slice %29 {offsets = [2, 0], sizes = [1, 256], strides = [1, 1]} : vector<8x256xf32> to vector<1x256xf32>
    %35 = tpu.concatenate %33, %34 in 0 : vector<1x256xf32>, vector<1x256xf32> -> vector<2x256xf32>
    %c0_8 = arith.constant 0 : index
    %c0_9 = arith.constant 0 : index
    %36 = vector.load %arg5[%c0_8, %c0_9] : memref<2x256xf32, #tpu.memory_space<vmem>>, vector<2x256xf32>
    %37 = arith.addf %36, %35 : vector<2x256xf32>
    %c0_10 = arith.constant 0 : index
    %c0_11 = arith.constant 0 : index
    %38 = vector.load %arg5[%c0_10, %c0_11] : memref<2x256xf32, #tpu.memory_space<vmem>>, vector<2x256xf32>
    tpu.vector_store %arg5[%c0_10, %c0_11], %37 {strides = array<i32>} : memref<2x256xf32, #tpu.memory_space<vmem>>, vector<2x256xf32>,
    %c0_12 = arith.constant 0 : index
    %c0_13 = arith.constant 0 : index
    %39 = vector.load %arg6[%c0_12, %c0_13] : memref<2x256xf32, #tpu.memory_space<vmem>>, vector<2x256xf32>
    %40 = arith.addf %39, %32 : vector<2x256xf32>
    %c0_14 = arith.constant 0 : index
    %c0_15 = arith.constant 0 : index
    %41 = vector.load %arg6[%c0_14, %c0_15] : memref<2x256xf32, #tpu.memory_space<vmem>>, vector<2x256xf32>
    tpu.vector_store %arg6[%c0_14, %c0_15], %40 {strides = array<i32>} : memref<2x256xf32, #tpu.memory_space<vmem>>, vector<2x256xf32>,
    return
  }
  func.func @transform_0(%arg0: i32, %arg1: i32) -> (i32, i32) {
    %c0_i32 = arith.constant 0 : i32
    %c0_i32_0 = arith.constant 0 : i32
    return %arg0, %c0_i32 : i32, i32
  }
  func.func @transform_1(%arg0: i32, %arg1: i32) -> (i32, i32) {
    %c0_i32 = arith.constant 0 : i32
    %c0_i32_0 = arith.constant 0 : i32
    return %c0_i32, %arg1 : i32, i32
  }
  func.func @transform_2(%arg0: i32, %arg1: i32) -> (i32, i32) {
    %c0_i32 = arith.constant 0 : i32
    %c0_i32_0 = arith.constant 0 : i32
    return %c0_i32, %arg1 : i32, i32
  }
  func.func @transform_3(%arg0: i32, %arg1: i32) -> (i32, i32) {
    %c0_i32 = arith.constant 0 : i32
    %c0_i32_0 = arith.constant 0 : i32
    return %c0_i32, %arg0 : i32, i32
  }
  func.func @transform_4(%arg0: i32, %arg1: i32) -> (i32, i32) {
    %c0_i32 = arith.constant 0 : i32
    %c0_i32_0 = arith.constant 0 : i32
    return %c0_i32, %arg0 : i32, i32
  }
}

</mosaic_0001>

<llo_original>
// kernel: tpu_custom_call.1
$region0: #{tpu_custom_call.1}
  #allocation0 [shape = 'u32[]', space=smem, size = 0x4, offset = 0x4, fixed_abs, tag = 'smem constant byte address 0x4 - core index']
  #allocation1 [shape = 'u32[144,128]{1,0:T(1,128)}', space=vmem, size = 0x12000, scoped, tag = 'internal scratch']
  %s0 = inlined_call_operand.vmem [shape: f32[256,1], index: 0, kind: input, shape index: {}]
  %s1 = inlined_call_operand.vmem [shape: f32[2,256], index: 1, kind: input, shape index: {}]
  %s2 = inlined_call_operand.vmem [shape: bf16[8,256], index: 2, kind: input, shape index: {}]
  %s3 = inlined_call_operand.hbm [shape: f32[2,256], index: 3, kind: output, shape index: {0}]
  %s4 = inlined_call_operand.hbm [shape: f32[2,256], index: 4, kind: output, shape index: {1}]
  %5 = xla_tuple %s3, %s4
  %s6 = sld [smem:[#allocation0]]
  $region34: #{tpu_custom_call.1} parent=0
    _
  %s8 = ssub.s32 1, %s6
  %s9 = scalar_select 0, %s8, %s6
  $region1: #{tpu_custom_call.1} parent=0
    #allocation2 [shape = 'u8[2048]{0}', space=vmem, size = 0x800, scoped, tag = 'output window, operand 0, single buffered']
    #allocation3 [shape = 's32[1]{0}', space=sflag, size = 0x4, scoped, tag = 'scoped memory for tpu_custom_call.1']
    #allocation4 [shape = 'u8[2048]{0}', space=vmem, size = 0x800, scoped, tag = 'output window, operand 1, single buffered']
    #allocation5 [shape = 's32[1]{0}', space=sflag, size = 0x4, scoped, tag = 'scoped memory for tpu_custom_call.1']
    %10 = vsyncpa [#allocation3], 0
    %11 = vsyncpa [#allocation5], 0
    // Predicated region
    $region2: #{tpu_custom_call.1} parent=1 // pred_check
      _
    $region3: #{tpu_custom_call.1} parent=1 // pred_check_branch
      %13 = sbr.rel (0) target = $region5
    $region4: #{tpu_custom_call.1} parent=1 // pred_region
      _
    $region5: #{tpu_custom_call.1} parent=1 // pred_fallthru
      _
    // Predicated region
    $region6: #{tpu_custom_call.1} parent=1 // pred_check
      _
    $region7: #{tpu_custom_call.1} parent=1 // pred_check_branch
      %15 = sbr.rel (0) target = $region9
    $region8: #{tpu_custom_call.1} parent=1 // pred_region
      _
    $region9: #{tpu_custom_call.1} parent=1 // pred_fallthru
      _
    // Predicated region
    $region10: #{tpu_custom_call.1} parent=1 // pred_check
      _
    $region11: #{tpu_custom_call.1} parent=1 // pred_check_branch
      %17 = sbr.rel (0) target = $region13
    $region12: #{tpu_custom_call.1} parent=1 // pred_region
      _
    $region13: #{tpu_custom_call.1} parent=1 // pred_fallthru
      _
    %p18 = scmp.eq.s32.totalorder 0, 0
    // Predicated region
    $region14: #{tpu_custom_call.1} parent=1 // pred_check
      %p19 = pneg %p18
    $region15: #{tpu_custom_call.1} parent=1 // pred_check_branch
      %21 = sbr.rel (%p19) target = $region17
    $region16: #{tpu_custom_call.1} parent=1 // pred_region
      %22 = vst [vmem:[#allocation2] sm:$0xf] 0.0
      %23 = vst [vmem:[#allocation4] sm:$0xf] 0.0
    $region17: #{tpu_custom_call.1} parent=1 // pred_fallthru
      _
    %v24 = vld [vmem:[%s0] sm:$0xff]
    %v25 = vld [vmem:[%s0 + $0x8] sm:$0xff]
    %v26 = vld [vmem:[%s0 + $0x10] sm:$0xff]
    %v27 = vld [vmem:[%s0 + $0x18] sm:$0xff]
    %v28 = vld [vmem:[%s0 + $0x20] sm:$0xff]
    %v29 = vld [vmem:[%s0 + $0x28] sm:$0xff]
    %v30 = vld [vmem:[%s0 + $0x30] sm:$0xff]
    %v31 = vld [vmem:[%s0 + $0x38] sm:$0xff]
    %v32 = vld [vmem:[%s0 + $0x40] sm:$0xff]
    %v33 = vld [vmem:[%s0 + $0x48] sm:$0xff]
    %v34 = vld [vmem:[%s0 + $0x50] sm:$0xff]
    %v35 = vld [vmem:[%s0 + $0x58] sm:$0xff]
    %v36 = vld [vmem:[%s0 + $0x60] sm:$0xff]
    %v37 = vld [vmem:[%s0 + $0x68] sm:$0xff]
    %v38 = vld [vmem:[%s0 + $0x70] sm:$0xff]
    %v39 = vld [vmem:[%s0 + $0x78] sm:$0xff]
    %v40 = vld [vmem:[%s0 + $0x80] sm:$0xff]
    %v41 = vld [vmem:[%s0 + $0x88] sm:$0xff]
    %v42 = vld [vmem:[%s0 + $0x90] sm:$0xff]
    %v43 = vld [vmem:[%s0 + $0x98] sm:$0xff]
    %v44 = vld [vmem:[%s0 + $0xa0] sm:$0xff]
    %v45 = vld [vmem:[%s0 + $0xa8] sm:$0xff]
    %v46 = vld [vmem:[%s0 + $0xb0] sm:$0xff]
    %v47 = vld [vmem:[%s0 + $0xb8] sm:$0xff]
    %v48 = vld [vmem:[%s0 + $0xc0] sm:$0xff]
    %v49 = vld [vmem:[%s0 + $0xc8] sm:$0xff]
    %v50 = vld [vmem:[%s0 + $0xd0] sm:$0xff]
    %v51 = vld [vmem:[%s0 + $0xd8] sm:$0xff]
    %v52 = vld [vmem:[%s0 + $0xe0] sm:$0xff]
    %v53 = vld [vmem:[%s0 + $0xe8] sm:$0xff]
    %v54 = vld [vmem:[%s0 + $0xf0] sm:$0xff]
    %v55 = vld [vmem:[%s0 + $0xf8] sm:$0xff]
    %v56 = vld [vmem:[%s2] sm:$0xff]
    %v57 = vld [vmem:[%s1] ss:$2 sm:$0x3]
    %v59 = vlaneseq
    %v60 = vshrl.u32 %v59, 7
    %v61 = vsub.s32 0, %v60
    %v62 = vrot.slane %v57, %v61
    %v63 = vlaneseq
    %v64 = vshrl.u32 %v63, 7
    %v65 = vsub.s32 1, %v64
    %v66 = vrot.slane %v57, %v65
    %70 = vset.pattern.permute.xlu0 0
    %71 = vperm.xlu0 %70, %v24
    %v72 = vpop.permute.xlu0 %71
    %75 = vset.pattern.permute.xlu0 0
    %76 = vperm.xlu0 %75, %v25
    %v77 = vpop.permute.xlu0 %76
    %80 = vset.pattern.permute.xlu0 0
    %81 = vperm.xlu0 %80, %v26
    %v82 = vpop.permute.xlu0 %81
    %85 = vset.pattern.permute.xlu0 0
    %86 = vperm.xlu0 %85, %v27
    %v87 = vpop.permute.xlu0 %86
    %90 = vset.pattern.permute.xlu0 0
    %91 = vperm.xlu0 %90, %v28
    %v92 = vpop.permute.xlu0 %91
    %95 = vset.pattern.permute.xlu0 0
    %96 = vperm.xlu0 %95, %v29
    %v97 = vpop.permute.xlu0 %96
    %100 = vset.pattern.permute.xlu0 0
    %101 = vperm.xlu0 %100, %v30
    %v102 = vpop.permute.xlu0 %101
    %105 = vset.pattern.permute.xlu0 0
    %106 = vperm.xlu0 %105, %v31
    %v107 = vpop.permute.xlu0 %106
    %110 = vset.pattern.permute.xlu0 0
    %111 = vperm.xlu0 %110, %v32
    %v112 = vpop.permute.xlu0 %111
    %115 = vset.pattern.permute.xlu0 0
    %116 = vperm.xlu0 %115, %v33
    %v117 = vpop.permute.xlu0 %116
    %120 = vset.pattern.permute.xlu0 0
    %121 = vperm.xlu0 %120, %v34
    %v122 = vpop.permute.xlu0 %121
    %125 = vset.pattern.permute.xlu0 0
    %126 = vperm.xlu0 %125, %v35
    %v127 = vpop.permute.xlu0 %126
    %130 = vset.pattern.permute.xlu0 0
    %131 = vperm.xlu0 %130, %v36
    %v132 = vpop.permute.xlu0 %131
    %135 = vset.pattern.permute.xlu0 0
    %136 = vperm.xlu0 %135, %v37
    %v137 = vpop.permute.xlu0 %136
    %140 = vset.pattern.permute.xlu0 0
    %141 = vperm.xlu0 %140, %v38
    %v142 = vpop.permute.xlu0 %141
    %145 = vset.pattern.permute.xlu0 0
    %146 = vperm.xlu0 %145, %v39
    %v147 = vpop.permute.xlu0 %146
    %150 = vset.pattern.permute.xlu0 0
    %151 = vperm.xlu0 %150, %v40
    %v152 = vpop.permute.xlu0 %151
    %155 = vset.pattern.permute.xlu0 0
    %156 = vperm.xlu0 %155, %v41
    %v157 = vpop.permute.xlu0 %156
    %160 = vset.pattern.permute.xlu0 0
    %161 = vperm.xlu0 %160, %v42
    %v162 = vpop.permute.xlu0 %161
    %165 = vset.pattern.permute.xlu0 0
    %166 = vperm.xlu0 %165, %v43
    %v167 = vpop.permute.xlu0 %166
    %170 = vset.pattern.permute.xlu0 0
    %171 = vperm.xlu0 %170, %v44
    %v172 = vpop.permute.xlu0 %171
    %175 = vset.pattern.permute.xlu0 0
    %176 = vperm.xlu0 %175, %v45
    %v177 = vpop.permute.xlu0 %176
    %180 = vset.pattern.permute.xlu0 0
    %181 = vperm.xlu0 %180, %v46
    %v182 = vpop.permute.xlu0 %181
    %185 = vset.pattern.permute.xlu0 0
    %186 = vperm.xlu0 %185, %v47
    %v187 = vpop.permute.xlu0 %186
    %190 = vset.pattern.permute.xlu0 0
    %191 = vperm.xlu0 %190, %v48
    %v192 = vpop.permute.xlu0 %191
    %195 = vset.pattern.permute.xlu0 0
    %196 = vperm.xlu0 %195, %v49
    %v197 = vpop.permute.xlu0 %196
    %200 = vset.pattern.permute.xlu0 0
    %201 = vperm.xlu0 %200, %v50
    %v202 = vpop.permute.xlu0 %201
    %205 = vset.pattern.permute.xlu0 0
    %206 = vperm.xlu0 %205, %v51
    %v207 = vpop.permute.xlu0 %206
    %210 = vset.pattern.permute.xlu0 0
    %211 = vperm.xlu0 %210, %v52
    %v212 = vpop.permute.xlu0 %211
    %215 = vset.pattern.permute.xlu0 0
    %216 = vperm.xlu0 %215, %v53
    %v217 = vpop.permute.xlu0 %216
    %220 = vset.pattern.permute.xlu0 0
    %221 = vperm.xlu0 %220, %v54
    %v222 = vpop.permute.xlu0 %221
    %225 = vset.pattern.permute.xlu0 0
    %226 = vperm.xlu0 %225, %v55
    %v227 = vpop.permute.xlu0 %226
    %vm229 = vcmp.ge.f32.partialorder %v62, %v72
    %vm230 = vcmp.ge.f32.partialorder %v66, %v72
    %vm231 = vcmp.ge.f32.partialorder %v62, %v77
    %vm232 = vcmp.ge.f32.partialorder %v66, %v77
    %vm233 = vcmp.ge.f32.partialorder %v62, %v82
    %vm234 = vcmp.ge.f32.partialorder %v66, %v82
    %vm235 = vcmp.ge.f32.partialorder %v62, %v87
    %vm236 = vcmp.ge.f32.partialorder %v66, %v87
    %vm237 = vcmp.ge.f32.partialorder %v62, %v92
    %vm238 = vcmp.ge.f32.partialorder %v66, %v92
    %vm239 = vcmp.ge.f32.partialorder %v62, %v97
    %vm240 = vcmp.ge.f32.partialorder %v66, %v97
    %vm241 = vcmp.ge.f32.partialorder %v62, %v102
    %vm242 = vcmp.ge.f32.partialorder %v66, %v102
    %vm243 = vcmp.ge.f32.partialorder %v62, %v107
    %vm244 = vcmp.ge.f32.partialorder %v66, %v107
    %vm245 = vcmp.ge.f32.partialorder %v62, %v112
    %vm246 = vcmp.ge.f32.partialorder %v66, %v112
    %vm247 = vcmp.ge.f32.partialorder %v62, %v117
    %vm248 = vcmp.ge.f32.partialorder %v66, %v117
    %vm249 = vcmp.ge.f32.partialorder %v62, %v122
    %vm250 = vcmp.ge.f32.partialorder %v66, %v122
    %vm251 = vcmp.ge.f32.partialorder %v62, %v127
    %vm252 = vcmp.ge.f32.partialorder %v66, %v127
    %vm253 = vcmp.ge.f32.partialorder %v62, %v132
    %vm254 = vcmp.ge.f32.partialorder %v66, %v132
    %vm255 = vcmp.ge.f32.partialorder %v62, %v137
    %vm256 = vcmp.ge.f32.partialorder %v66, %v137
    %vm257 = vcmp.ge.f32.partialorder %v62, %v142
    %vm258 = vcmp.ge.f32.partialorder %v66, %v142
    %vm259 = vcmp.ge.f32.partialorder %v62, %v147
    %vm260 = vcmp.ge.f32.partialorder %v66, %v147
    %vm261 = vcmp.ge.f32.partialorder %v62, %v152
    %vm262 = vcmp.ge.f32.partialorder %v66, %v152
    %vm263 = vcmp.ge.f32.partialorder %v62, %v157
    %vm264 = vcmp.ge.f32.partialorder %v66, %v157
    %vm265 = vcmp.ge.f32.partialorder %v62, %v162
    %vm266 = vcmp.ge.f32.partialorder %v66, %v162
    %vm267 = vcmp.ge.f32.partialorder %v62, %v167
    %vm268 = vcmp.ge.f32.partialorder %v66, %v167
    %vm269 = vcmp.ge.f32.partialorder %v62, %v172
    %vm270 = vcmp.ge.f32.partialorder %v66, %v172
    %vm271 = vcmp.ge.f32.partialorder %v62, %v177
    %vm272 = vcmp.ge.f32.partialorder %v66, %v177
    %vm273 = vcmp.ge.f32.partialorder %v62, %v182
    %vm274 = vcmp.ge.f32.partialorder %v66, %v182
    %vm275 = vcmp.ge.f32.partialorder %v62, %v187
    %vm276 = vcmp.ge.f32.partialorder %v66, %v187
    %vm277 = vcmp.ge.f32.partialorder %v62, %v192
    %vm278 = vcmp.ge.f32.partialorder %v66, %v192
    %vm279 = vcmp.ge.f32.partialorder %v62, %v197
    %vm280 = vcmp.ge.f32.partialorder %v66, %v197
    %vm281 = vcmp.ge.f32.partialorder %v62, %v202
    %vm282 = vcmp.ge.f32.partialorder %v66, %v202
    %vm283 = vcmp.ge.f32.partialorder %v62, %v207
    %vm284 = vcmp.ge.f32.partialorder %v66, %v207
    %vm285 = vcmp.ge.f32.partialorder %v62, %v212
    %vm286 = vcmp.ge.f32.partialorder %v66, %v212
    %vm287 = vcmp.ge.f32.partialorder %v62, %v217
    %vm288 = vcmp.ge.f32.partialorder %v66, %v217
    %vm289 = vcmp.ge.f32.partialorder %v62, %v222
    %vm290 = vcmp.ge.f32.partialorder %v66, %v222
    %vm291 = vcmp.ge.f32.partialorder %v62, %v227
    %vm292 = vcmp.ge.f32.partialorder %v66, %v227
    %v293 = vsel %vm229, 1, 0
    %v294 = vsel %vm230, 1, 0
    %v295 = vsel %vm231, 1, 0
    %v296 = vsel %vm232, 1, 0
    %v297 = vsel %vm233, 1, 0
    %v298 = vsel %vm234, 1, 0
    %v299 = vsel %vm235, 1, 0
    %v300 = vsel %vm236, 1, 0
    %v301 = vsel %vm237, 1, 0
    %v302 = vsel %vm238, 1, 0
    %v303 = vsel %vm239, 1, 0
    %v304 = vsel %vm240, 1, 0
    %v305 = vsel %vm241, 1, 0
    %v306 = vsel %vm242, 1, 0
    %v307 = vsel %vm243, 1, 0
    %v308 = vsel %vm244, 1, 0
    %v309 = vsel %vm245, 1, 0
    %v310 = vsel %vm246, 1, 0
    %v311 = vsel %vm247, 1, 0
    %v312 = vsel %vm248, 1, 0
    %v313 = vsel %vm249, 1, 0
    %v314 = vsel %vm250, 1, 0
    %v315 = vsel %vm251, 1, 0
    %v316 = vsel %vm252, 1, 0
    %v317 = vsel %vm253, 1, 0
    %v318 = vsel %vm254, 1, 0
    %v319 = vsel %vm255, 1, 0
    %v320 = vsel %vm256, 1, 0
    %v321 = vsel %vm257, 1, 0
    %v322 = vsel %vm258, 1, 0
    %v323 = vsel %vm259, 1, 0
    %v324 = vsel %vm260, 1, 0
    %v325 = vsel %vm261, 1, 0
    %v326 = vsel %vm262, 1, 0
    %v327 = vsel %vm263, 1, 0
    %v328 = vsel %vm264, 1, 0
    %v329 = vsel %vm265, 1, 0
    %v330 = vsel %vm266, 1, 0
    %v331 = vsel %vm267, 1, 0
    %v332 = vsel %vm268, 1, 0
    %v333 = vsel %vm269, 1, 0
    %v334 = vsel %vm270, 1, 0
    %v335 = vsel %vm271, 1, 0
    %v336 = vsel %vm272, 1, 0
    %v337 = vsel %vm273, 1, 0
    %v338 = vsel %vm274, 1, 0
    %v339 = vsel %vm275, 1, 0
    %v340 = vsel %vm276, 1, 0
    %v341 = vsel %vm277, 1, 0
    %v342 = vsel %vm278, 1, 0
    %v343 = vsel %vm279, 1, 0
    %v344 = vsel %vm280, 1, 0
    %v345 = vsel %vm281, 1, 0
    %v346 = vsel %vm282, 1, 0
    %v347 = vsel %vm283, 1, 0
    %v348 = vsel %vm284, 1, 0
    %v349 = vsel %vm285, 1, 0
    %v350 = vsel %vm286, 1, 0
    %v351 = vsel %vm287, 1, 0
    %v352 = vsel %vm288, 1, 0
    %v353 = vsel %vm289, 1, 0
    %v354 = vsel %vm290, 1, 0
    %v355 = vsel %vm291, 1, 0
    %v356 = vsel %vm292, 1, 0
    %v357 = vcvt.s32.f32 %v293
    %v358 = vcvt.s32.f32 %v294
    %v359 = vcvt.s32.f32 %v295
    %v360 = vcvt.s32.f32 %v296
    %v361 = vcvt.s32.f32 %v297
    %v362 = vcvt.s32.f32 %v298
    %v363 = vcvt.s32.f32 %v299
    %v364 = vcvt.s32.f32 %v300
    %v365 = vcvt.s32.f32 %v301
    %v366 = vcvt.s32.f32 %v302
    %v367 = vcvt.s32.f32 %v303
    %v368 = vcvt.s32.f32 %v304
    %v369 = vcvt.s32.f32 %v305
    %v370 = vcvt.s32.f32 %v306
    %v371 = vcvt.s32.f32 %v307
    %v372 = vcvt.s32.f32 %v308
    %v373 = vcvt.s32.f32 %v309
    %v374 = vcvt.s32.f32 %v310
    %v375 = vcvt.s32.f32 %v311
    %v376 = vcvt.s32.f32 %v312
    %v377 = vcvt.s32.f32 %v313
    %v378 = vcvt.s32.f32 %v314
    %v379 = vcvt.s32.f32 %v315
    %v380 = vcvt.s32.f32 %v316
    %v381 = vcvt.s32.f32 %v317
    %v382 = vcvt.s32.f32 %v318
    %v383 = vcvt.s32.f32 %v319
    %v384 = vcvt.s32.f32 %v320
    %v385 = vcvt.s32.f32 %v321
    %v386 = vcvt.s32.f32 %v322
    %v387 = vcvt.s32.f32 %v323
    %v388 = vcvt.s32.f32 %v324
    %v389 = vcvt.s32.f32 %v325
    %v390 = vcvt.s32.f32 %v326
    %v391 = vcvt.s32.f32 %v327
    %v392 = vcvt.s32.f32 %v328
    %v393 = vcvt.s32.f32 %v329
    %v394 = vcvt.s32.f32 %v330
    %v395 = vcvt.s32.f32 %v331
    %v396 = vcvt.s32.f32 %v332
    %v397 = vcvt.s32.f32 %v333
    %v398 = vcvt.s32.f32 %v334
    %v399 = vcvt.s32.f32 %v335
    %v400 = vcvt.s32.f32 %v336
    %v401 = vcvt.s32.f32 %v337
    %v402 = vcvt.s32.f32 %v338
    %v403 = vcvt.s32.f32 %v339
    %v404 = vcvt.s32.f32 %v340
    %v405 = vcvt.s32.f32 %v341
    %v406 = vcvt.s32.f32 %v342
    %v407 = vcvt.s32.f32 %v343
    %v408 = vcvt.s32.f32 %v344
    %v409 = vcvt.s32.f32 %v345
    %v410 = vcvt.s32.f32 %v346
    %v411 = vcvt.s32.f32 %v347
    %v412 = vcvt.s32.f32 %v348
    %v413 = vcvt.s32.f32 %v349
    %v414 = vcvt.s32.f32 %v350
    %v415 = vcvt.s32.f32 %v351
    %v416 = vcvt.s32.f32 %v352
    %v417 = vcvt.s32.f32 %v353
    %v418 = vcvt.s32.f32 %v354
    %v419 = vcvt.s32.f32 %v355
    %v420 = vcvt.s32.f32 %v356
    %v421 = vpack.c.bf16 %v359, %v357
    %v422 = vpack.c.bf16 %v360, %v358
    %v423 = vpack.c.bf16 %v363, %v361
    %v424 = vpack.c.bf16 %v364, %v362
    %v425 = vpack.c.bf16 %v367, %v365
    %v426 = vpack.c.bf16 %v368, %v366
    %v427 = vpack.c.bf16 %v371, %v369
    %v428 = vpack.c.bf16 %v372, %v370
    %v429 = vpack.c.bf16 %v375, %v373
    %v430 = vpack.c.bf16 %v376, %v374
    %v431 = vpack.c.bf16 %v379, %v377
    %v432 = vpack.c.bf16 %v380, %v378
    %v433 = vpack.c.bf16 %v383, %v381
    %v434 = vpack.c.bf16 %v384, %v382
    %v435 = vpack.c.bf16 %v387, %v385
    %v436 = vpack.c.bf16 %v388, %v386
    %v437 = vpack.c.bf16 %v391, %v389
    %v438 = vpack.c.bf16 %v392, %v390
    %v439 = vpack.c.bf16 %v395, %v393
    %v440 = vpack.c.bf16 %v396, %v394
    %v441 = vpack.c.bf16 %v399, %v397
    %v442 = vpack.c.bf16 %v400, %v398
    %v443 = vpack.c.bf16 %v403, %v401
    %v444 = vpack.c.bf16 %v404, %v402
    %v445 = vpack.c.bf16 %v407, %v405
    %v446 = vpack.c.bf16 %v408, %v406
    %v447 = vpack.c.bf16 %v411, %v409
    %v448 = vpack.c.bf16 %v412, %v410
    %v449 = vpack.c.bf16 %v415, %v413
    %v450 = vpack.c.bf16 %v416, %v414
    %v451 = vpack.c.bf16 %v419, %v417
    %v452 = vpack.c.bf16 %v420, %v418
    %v454 = vunpack.c.l.b16 %v56
    %v455 = vunpack.c.h.b16 %v56
    %v456 = vpack.c.b16 %v454, %v454
    %v457 = vpack.c.b16 %v455, %v455
    %460 = vmatprep.subr.bf16.mxu0 %v422
    %461 = vmatpush1.bf16.xpose.msra.mxu0 %v421
    %462 = vmatprep.subr.bf16.mxu0 %v424
    %463 = vmatpush1.bf16.xpose.msra.mxu0 %v423
    %464 = vmatprep.subr.bf16.mxu0 %v426
    %465 = vmatpush1.bf16.xpose.msra.mxu0 %v425
    %466 = vmatprep.subr.bf16.mxu0 %v428
    %467 = vmatpush1.bf16.xpose.msra.mxu0 %v427
    %468 = vmatprep.subr.bf16.mxu0 %v430
    %469 = vmatpush1.bf16.xpose.msra.mxu0 %v429
    %470 = vmatprep.subr.bf16.mxu0 %v432
    %471 = vmatpush1.bf16.xpose.msra.mxu0 %v431
    %472 = vmatprep.subr.bf16.mxu0 %v434
    %473 = vmatpush1.bf16.xpose.msra.mxu0 %v433
    %474 = vmatprep.subr.bf16.mxu0 %v436
    %475 = vmatpush1.bf16.xpose.msra.mxu0 %v435
    %476 = vmatprep.subr.bf16.mxu0 %v438
    %477 = vmatpush1.bf16.xpose.msra.mxu0 %v437
    %478 = vmatprep.subr.bf16.mxu0 %v440
    %479 = vmatpush1.bf16.xpose.msra.mxu0 %v439
    %480 = vmatprep.subr.bf16.mxu0 %v442
    %481 = vmatpush1.bf16.xpose.msra.mxu0 %v441
    %482 = vmatprep.subr.bf16.mxu0 %v444
    %483 = vmatpush1.bf16.xpose.msra.mxu0 %v443
    %484 = vmatprep.subr.bf16.mxu0 %v446
    %485 = vmatpush1.bf16.xpose.msra.mxu0 %v445
    %486 = vmatprep.subr.bf16.mxu0 %v448
    %487 = vmatpush1.bf16.xpose.msra.mxu0 %v447
    %488 = vmatprep.subr.bf16.mxu0 %v450
    %489 = vmatpush1.bf16.xpose.msra.mxu0 %v449
    %490 = vmatprep.subr.bf16.mxu0 %v452
    %491 = vmatpush1.bf16.xpose.msra.mxu0 %v451
    %492 = vmatprep.mubr.bf16.mxu0 %v457
    %493 = vmatmul.mubr.bf16.gmra.mrb[0].mxu0 %v456
    %v494 = vpop.f32.mrb[0].mxu0
    %v495 = vadd.f32 0.0, %v494
    %v496 = vpop.f32.mrb[0].mxu0
    %v497 = vadd.f32 0.0, %v496
    %v498 = vpop.f32.mrb[0].mxu0
    %v499 = vpop.f32.mrb[0].mxu0
    %500 = vdwg.mxu0
    %s501 = scalar_lea.vmem %s1, 1
    %v502 = vld [vmem:[%s501] ss:$2 sm:$0x3]
    %v504 = vlaneseq
    %v505 = vshrl.u32 %v504, 7
    %v506 = vsub.s32 0, %v505
    %v507 = vrot.slane %v502, %v506
    %v508 = vlaneseq
    %v509 = vshrl.u32 %v508, 7
    %v510 = vsub.s32 1, %v509
    %v511 = vrot.slane %v502, %v510
    %vm514 = vcmp.ge.f32.partialorder %v507, %v72
    %vm515 = vcmp.ge.f32.partialorder %v511, %v72
    %vm516 = vcmp.ge.f32.partialorder %v507, %v77
    %vm517 = vcmp.ge.f32.partialorder %v511, %v77
    %vm518 = vcmp.ge.f32.partialorder %v507, %v82
    %vm519 = vcmp.ge.f32.partialorder %v511, %v82
    %vm520 = vcmp.ge.f32.partialorder %v507, %v87
    %vm521 = vcmp.ge.f32.partialorder %v511, %v87
    %vm522 = vcmp.ge.f32.partialorder %v507, %v92
    %vm523 = vcmp.ge.f32.partialorder %v511, %v92
    %vm524 = vcmp.ge.f32.partialorder %v507, %v97
    %vm525 = vcmp.ge.f32.partialorder %v511, %v97
    %vm526 = vcmp.ge.f32.partialorder %v507, %v102
    %vm527 = vcmp.ge.f32.partialorder %v511, %v102
    %vm528 = vcmp.ge.f32.partialorder %v507, %v107
    %vm529 = vcmp.ge.f32.partialorder %v511, %v107
    %vm530 = vcmp.ge.f32.partialorder %v507, %v112
    %vm531 = vcmp.ge.f32.partialorder %v511, %v112
    %vm532 = vcmp.ge.f32.partialorder %v507, %v117
    %vm533 = vcmp.ge.f32.partialorder %v511, %v117
    %vm534 = vcmp.ge.f32.partialorder %v507, %v122
    %vm535 = vcmp.ge.f32.partialorder %v511, %v122
    %vm536 = vcmp.ge.f32.partialorder %v507, %v127
    %vm537 = vcmp.ge.f32.partialorder %v511, %v127
    %vm538 = vcmp.ge.f32.partialorder %v507, %v132
    %vm539 = vcmp.ge.f32.partialorder %v511, %v132
    %vm540 = vcmp.ge.f32.partialorder %v507, %v137
    %vm541 = vcmp.ge.f32.partialorder %v511, %v137
    %vm542 = vcmp.ge.f32.partialorder %v507, %v142
    %vm543 = vcmp.ge.f32.partialorder %v511, %v142
    %vm544 = vcmp.ge.f32.partialorder %v507, %v147
    %vm545 = vcmp.ge.f32.partialorder %v511, %v147
    %vm546 = vcmp.ge.f32.partialorder %v507, %v152
    %vm547 = vcmp.ge.f32.partialorder %v511, %v152
    %vm548 = vcmp.ge.f32.partialorder %v507, %v157
    %vm549 = vcmp.ge.f32.partialorder %v511, %v157
    %vm550 = vcmp.ge.f32.partialorder %v507, %v162
    %vm551 = vcmp.ge.f32.partialorder %v511, %v162
    %vm552 = vcmp.ge.f32.partialorder %v507, %v167
    %vm553 = vcmp.ge.f32.partialorder %v511, %v167
    %vm554 = vcmp.ge.f32.partialorder %v507, %v172
    %vm555 = vcmp.ge.f32.partialorder %v511, %v172
    %vm556 = vcmp.ge.f32.partialorder %v507, %v177
    %vm557 = vcmp.ge.f32.partialorder %v511, %v177
    %vm558 = vcmp.ge.f32.partialorder %v507, %v182
    %vm559 = vcmp.ge.f32.partialorder %v511, %v182
    %vm560 = vcmp.ge.f32.partialorder %v507, %v187
    %vm561 = vcmp.ge.f32.partialorder %v511, %v187
    %vm562 = vcmp.ge.f32.partialorder %v507, %v192
    %vm563 = vcmp.ge.f32.partialorder %v511, %v192
    %vm564 = vcmp.ge.f32.partialorder %v507, %v197
    %vm565 = vcmp.ge.f32.partialorder %v511, %v197
    %vm566 = vcmp.ge.f32.partialorder %v507, %v202
    %vm567 = vcmp.ge.f32.partialorder %v511, %v202
    %vm568 = vcmp.ge.f32.partialorder %v507, %v207
    %vm569 = vcmp.ge.f32.partialorder %v511, %v207
    %vm570 = vcmp.ge.f32.partialorder %v507, %v212
    %vm571 = vcmp.ge.f32.partialorder %v511, %v212
    %vm572 = vcmp.ge.f32.partialorder %v507, %v217
    %vm573 = vcmp.ge.f32.partialorder %v511, %v217
    %vm574 = vcmp.ge.f32.partialorder %v507, %v222
    %vm575 = vcmp.ge.f32.partialorder %v511, %v222
    %vm576 = vcmp.ge.f32.partialorder %v507, %v227
    %vm577 = vcmp.ge.f32.partialorder %v511, %v227
    %v578 = vsel %vm514, 1, 0
    %v579 = vsel %vm515, 1, 0
    %v580 = vsel %vm516, 1, 0
    %v581 = vsel %vm517, 1, 0
    %v582 = vsel %vm518, 1, 0
    %v583 = vsel %vm519, 1, 0
    %v584 = vsel %vm520, 1, 0
    %v585 = vsel %vm521, 1, 0
    %v586 = vsel %vm522, 1, 0
    %v587 = vsel %vm523, 1, 0
    %v588 = vsel %vm524, 1, 0
    %v589 = vsel %vm525, 1, 0
    %v590 = vsel %vm526, 1, 0
    %v591 = vsel %vm527, 1, 0
    %v592 = vsel %vm528, 1, 0
    %v593 = vsel %vm529, 1, 0
    %v594 = vsel %vm530, 1, 0
    %v595 = vsel %vm531, 1, 0
    %v596 = vsel %vm532, 1, 0
    %v597 = vsel %vm533, 1, 0
    %v598 = vsel %vm534, 1, 0
    %v599 = vsel %vm535, 1, 0
    %v600 = vsel %vm536, 1, 0
    %v601 = vsel %vm537, 1, 0
    %v602 = vsel %vm538, 1, 0
    %v603 = vsel %vm539, 1, 0
    %v604 = vsel %vm540, 1, 0
    %v605 = vsel %vm541, 1, 0
    %v606 = vsel %vm542, 1, 0
    %v607 = vsel %vm543, 1, 0
    %v608 = vsel %vm544, 1, 0
    %v609 = vsel %vm545, 1, 0
    %v610 = vsel %vm546, 1, 0
    %v611 = vsel %vm547, 1, 0
    %v612 = vsel %vm548, 1, 0
    %v613 = vsel %vm549, 1, 0
    %v614 = vsel %vm550, 1, 0
    %v615 = vsel %vm551, 1, 0
    %v616 = vsel %vm552, 1, 0
    %v617 = vsel %vm553, 1, 0
    %v618 = vsel %vm554, 1, 0
    %v619 = vsel %vm555, 1, 0
    %v620 = vsel %vm556, 1, 0
    %v621 = vsel %vm557, 1, 0
    %v622 = vsel %vm558, 1, 0
    %v623 = vsel %vm559, 1, 0
    %v624 = vsel %vm560, 1, 0
    %v625 = vsel %vm561, 1, 0
    %v626 = vsel %vm562, 1, 0
    %v627 = vsel %vm563, 1, 0
    %v628 = vsel %vm564, 1, 0
    %v629 = vsel %vm565, 1, 0
    %v630 = vsel %vm566, 1, 0
    %v631 = vsel %vm567, 1, 0
    %v632 = vsel %vm568, 1, 0
    %v633 = vsel %vm569, 1, 0
    %v634 = vsel %vm570, 1, 0
    %v635 = vsel %vm571, 1, 0
    %v636 = vsel %vm572, 1, 0
    %v637 = vsel %vm573, 1, 0
    %v638 = vsel %vm574, 1, 0
    %v639 = vsel %vm575, 1, 0
    %v640 = vsel %vm576, 1, 0
    %v641 = vsel %vm577, 1, 0
    %v642 = vcvt.s32.f32 %v578
    %v643 = vcvt.s32.f32 %v579
    %v644 = vcvt.s32.f32 %v580
    %v645 = vcvt.s32.f32 %v581
    %v646 = vcvt.s32.f32 %v582
    %v647 = vcvt.s32.f32 %v583
    %v648 = vcvt.s32.f32 %v584
    %v649 = vcvt.s32.f32 %v585
    %v650 = vcvt.s32.f32 %v586
    %v651 = vcvt.s32.f32 %v587
    %v652 = vcvt.s32.f32 %v588
    %v653 = vcvt.s32.f32 %v589
    %v654 = vcvt.s32.f32 %v590
    %v655 = vcvt.s32.f32 %v591
    %v656 = vcvt.s32.f32 %v592
    %v657 = vcvt.s32.f32 %v593
    %v658 = vcvt.s32.f32 %v594
    %v659 = vcvt.s32.f32 %v595
    %v660 = vcvt.s32.f32 %v596
    %v661 = vcvt.s32.f32 %v597
    %v662 = vcvt.s32.f32 %v598
    %v663 = vcvt.s32.f32 %v599
    %v664 = vcvt.s32.f32 %v600
    %v665 = vcvt.s32.f32 %v601
    %v666 = vcvt.s32.f32 %v602
    %v667 = vcvt.s32.f32 %v603
    %v668 = vcvt.s32.f32 %v604
    %v669 = vcvt.s32.f32 %v605
    %v670 = vcvt.s32.f32 %v606
    %v671 = vcvt.s32.f32 %v607
    %v672 = vcvt.s32.f32 %v608
    %v673 = vcvt.s32.f32 %v609
    %v674 = vcvt.s32.f32 %v610
    %v675 = vcvt.s32.f32 %v611
    %v676 = vcvt.s32.f32 %v612
    %v677 = vcvt.s32.f32 %v613
    %v678 = vcvt.s32.f32 %v614
    %v679 = vcvt.s32.f32 %v615
    %v680 = vcvt.s32.f32 %v616
    %v681 = vcvt.s32.f32 %v617
    %v682 = vcvt.s32.f32 %v618
    %v683 = vcvt.s32.f32 %v619
    %v684 = vcvt.s32.f32 %v620
    %v685 = vcvt.s32.f32 %v621
    %v686 = vcvt.s32.f32 %v622
    %v687 = vcvt.s32.f32 %v623
    %v688 = vcvt.s32.f32 %v624
    %v689 = vcvt.s32.f32 %v625
    %v690 = vcvt.s32.f32 %v626
    %v691 = vcvt.s32.f32 %v627
    %v692 = vcvt.s32.f32 %v628
    %v693 = vcvt.s32.f32 %v629
    %v694 = vcvt.s32.f32 %v630
    %v695 = vcvt.s32.f32 %v631
    %v696 = vcvt.s32.f32 %v632
    %v697 = vcvt.s32.f32 %v633
    %v698 = vcvt.s32.f32 %v634
    %v699 = vcvt.s32.f32 %v635
    %v700 = vcvt.s32.f32 %v636
    %v701 = vcvt.s32.f32 %v637
    %v702 = vcvt.s32.f32 %v638
    %v703 = vcvt.s32.f32 %v639
    %v704 = vcvt.s32.f32 %v640
    %v705 = vcvt.s32.f32 %v641
    %v706 = vpack.c.bf16 %v644, %v642
    %v707 = vpack.c.bf16 %v645, %v643
    %v708 = vpack.c.bf16 %v648, %v646
    %v709 = vpack.c.bf16 %v649, %v647
    %v710 = vpack.c.bf16 %v652, %v650
    %v711 = vpack.c.bf16 %v653, %v651
    %v712 = vpack.c.bf16 %v656, %v654
    %v713 = vpack.c.bf16 %v657, %v655
    %v714 = vpack.c.bf16 %v660, %v658
    %v715 = vpack.c.bf16 %v661, %v659
    %v716 = vpack.c.bf16 %v664, %v662
    %v717 = vpack.c.bf16 %v665, %v663
    %v718 = vpack.c.bf16 %v668, %v666
    %v719 = vpack.c.bf16 %v669, %v667
    %v720 = vpack.c.bf16 %v672, %v670
    %v721 = vpack.c.bf16 %v673, %v671
    %v722 = vpack.c.bf16 %v676, %v674
    %v723 = vpack.c.bf16 %v677, %v675
    %v724 = vpack.c.bf16 %v680, %v678
    %v725 = vpack.c.bf16 %v681, %v679
    %v726 = vpack.c.bf16 %v684, %v682
    %v727 = vpack.c.bf16 %v685, %v683
    %v728 = vpack.c.bf16 %v688, %v686
    %v729 = vpack.c.bf16 %v689, %v687
    %v730 = vpack.c.bf16 %v692, %v690
    %v731 = vpack.c.bf16 %v693, %v691
    %v732 = vpack.c.bf16 %v696, %v694
    %v733 = vpack.c.bf16 %v697, %v695
    %v734 = vpack.c.bf16 %v700, %v698
    %v735 = vpack.c.bf16 %v701, %v699
    %v736 = vpack.c.bf16 %v704, %v702
    %v737 = vpack.c.bf16 %v705, %v703
    %738 = vmatprep.subr.bf16.mxu0 %v707
    %739 = vmatpush1.bf16.xpose.msra.mxu0 %v706
    %740 = vmatprep.subr.bf16.mxu0 %v709
    %741 = vmatpush1.bf16.xpose.msra.mxu0 %v708
    %742 = vmatprep.subr.bf16.mxu0 %v711
    %743 = vmatpush1.bf16.xpose.msra.mxu0 %v710
    %744 = vmatprep.subr.bf16.mxu0 %v713
    %745 = vmatpush1.bf16.xpose.msra.mxu0 %v712
    %746 = vmatprep.subr.bf16.mxu0 %v715
    %747 = vmatpush1.bf16.xpose.msra.mxu0 %v714
    %748 = vmatprep.subr.bf16.mxu0 %v717
    %749 = vmatpush1.bf16.xpose.msra.mxu0 %v716
    %750 = vmatprep.subr.bf16.mxu0 %v719
    %751 = vmatpush1.bf16.xpose.msra.mxu0 %v718
    %752 = vmatprep.subr.bf16.mxu0 %v721
    %753 = vmatpush1.bf16.xpose.msra.mxu0 %v720
    %754 = vmatprep.subr.bf16.mxu0 %v723
    %755 = vmatpush1.bf16.xpose.msra.mxu0 %v722
    %756 = vmatprep.subr.bf16.mxu0 %v725
    %757 = vmatpush1.bf16.xpose.msra.mxu0 %v724
    %758 = vmatprep.subr.bf16.mxu0 %v727
    %759 = vmatpush1.bf16.xpose.msra.mxu0 %v726
    %760 = vmatprep.subr.bf16.mxu0 %v729
    %761 = vmatpush1.bf16.xpose.msra.mxu0 %v728
    %762 = vmatprep.subr.bf16.mxu0 %v731
    %763 = vmatpush1.bf16.xpose.msra.mxu0 %v730
    %764 = vmatprep.subr.bf16.mxu0 %v733
    %765 = vmatpush1.bf16.xpose.msra.mxu0 %v732
    %766 = vmatprep.subr.bf16.mxu0 %v735
    %767 = vmatpush1.bf16.xpose.msra.mxu0 %v734
    %768 = vmatprep.subr.bf16.mxu0 %v737
    %769 = vmatpush1.bf16.xpose.msra.mxu0 %v736
    %770 = vmatprep.mubr.bf16.mxu0 %v457
    %771 = vmatmul.mubr.bf16.gmra.mrb[0].mxu0 %v456
    %v772 = vpop.f32.mrb[0].mxu0
    %v773 = vadd.f32 0.0, %v772
    %v774 = vpop.f32.mrb[0].mxu0
    %v775 = vadd.f32 0.0, %v774
    %v776 = vpop.f32.mrb[0].mxu0
    %v777 = vpop.f32.mrb[0].mxu0
    %778 = vdwg.mxu0
    %v781 = vrot.slane %v773, 7
    %v782 = vrot.slane %v775, 7
    %vm785 = vcmask 1040384
    %v786 = vsel %vm785, %v495, %v781
    %v787 = vsel %vm785, %v497, %v782
    %v790 = vrot.slane %v495, 1
    %v791 = vrot.slane %v497, 1
    %v794 = vrot.slane %v773, 1
    %v795 = vrot.slane %v775, 1
    %v798 = vsel %vm785, %v790, %v794
    %v799 = vsel %vm785, %v791, %v795
    %v800 = vld [vmem:[#allocation2] sm:$0xf]
    %v803 = vcombine.low %v798, %v799
    %v805 = vunpack.c.l.s4 1983009808
    %v806 = vunpack.c.0.s8 %v805
    %v807 = vlaneseq
    %v808 = vshrl.u32 %v807, 7
    %v809 = vsub.s32 %v806, %v808
    %v810 = vrot.slane %v803, %v809
    %v812 = vadd.f32 %v800, %v810
    %813 = vst [vmem:[#allocation2] sm:$0xf] %v812
    %v814 = vld [vmem:[#allocation4] sm:$0xf]
    %v817 = vcombine.low %v786, %v787
    %v819 = vunpack.c.l.s4 1983009808
    %v820 = vunpack.c.0.s8 %v819
    %v821 = vlaneseq
    %v822 = vshrl.u32 %v821, 7
    %v823 = vsub.s32 %v820, %v822
    %v824 = vrot.slane %v817, %v823
    %v826 = vadd.f32 %v814, %v824
    %827 = vst [vmem:[#allocation4] sm:$0xf] %v826
    // Predicated region
    $region18: #{tpu_custom_call.1} parent=1 // pred_check
      _
    $region19: #{tpu_custom_call.1} parent=1 // pred_check_branch
      %829 = sbr.rel (0) target = $region21
    $region20: #{tpu_custom_call.1} parent=1 // pred_region
      %s831 = ssub.s32 64, 64
      %832 = vsyncadd [#allocation3], %s831
      %s834 = sshll.u32 [#allocation2], 4
      %s835 = int_to_ptr.vmem [resolvable:$true] %s834
      %837 = dma.vmem_to_hbm [thread:$0]  %s835, 64, %s3, [#allocation3]
    $region21: #{tpu_custom_call.1} parent=1 // pred_fallthru
      _
    // Predicated region
    $region22: #{tpu_custom_call.1} parent=1 // pred_check
      _
    $region23: #{tpu_custom_call.1} parent=1 // pred_check_branch
      %839 = sbr.rel (0) target = $region25
    $region24: #{tpu_custom_call.1} parent=1 // pred_region
      %s841 = ssub.s32 64, 64
      %842 = vsyncadd [#allocation5], %s841
      %s844 = sshll.u32 [#allocation4], 4
      %s845 = int_to_ptr.vmem [resolvable:$true] %s844
      %847 = dma.vmem_to_hbm [thread:$0]  %s845, 64, %s4, [#allocation5]
    $region25: #{tpu_custom_call.1} parent=1 // pred_fallthru
      _
    // Predicated region
    $region26: #{tpu_custom_call.1} parent=1 // pred_check
      _
    $region27: #{tpu_custom_call.1} parent=1 // pred_check_branch
      %849 = sbr.rel (0) target = $region29
    $region28: #{tpu_custom_call.1} parent=1 // pred_region
      %850 = dma.done [#allocation3], 64
    $region29: #{tpu_custom_call.1} parent=1 // pred_fallthru
      _
    // Predicated region
    $region30: #{tpu_custom_call.1} parent=1 // pred_check
      _
    $region31: #{tpu_custom_call.1} parent=1 // pred_check_branch
      %852 = sbr.rel (0) target = $region33
    $region32: #{tpu_custom_call.1} parent=1 // pred_region
      %853 = dma.done [#allocation5], 64
    $region33: #{tpu_custom_call.1} parent=1 // pred_fallthru
      _
    %854 = vsyncpa [#allocation3], 1
    %855 = vsyncpa [#allocation5], 1

</llo_original>
